<compile_context>
chip_gen: v5e
topology: v5e:2x2
jax: 0.10.0
libtpu: 0.0.40
codegen_flags: <defaults>
</compile_context>

<pallas_src>
import math

import jax
import jax.numpy as jnp
from jax.experimental import pallas as pl
from jax.experimental.pallas import tpu as pltpu


def _round_up(n, m):
    return ((n + m - 1) // m) * m


# ---------------------------------------------------------------------------
# Generation-aware tile / VMEM configuration
# ---------------------------------------------------------------------------
def _tpu_hw_info():
    kind = ""
    try:
        kind = jax.devices()[0].device_kind.lower()
    except Exception:
        pass
    vmem = None
    try:
        vmem = getattr(pltpu.get_tpu_info(), "vmem_capacity_bytes", None)
    except Exception:
        pass
    return kind, vmem


def _tile_config():
    """Tile targets plus VMEM budget / vmem_limit cap (bytes) per generation."""
    kind, vmem = _tpu_hw_info()
    small_vmem = vmem is not None and vmem <= (80 << 20)
    if any(g in kind for g in ("v2", "v3", "v4", "v5")):
        # v5e class: compute-bound already at ~512 tiles; keep tk large so the
        # f32 accumulator RMW stays hidden behind the single vector-store slot.
        return dict(tm=512, tn=512, tk=1024, budget=64 << 20, cap=100 << 20)
    if "v7" in kind or small_vmem or (not kind and vmem is None):
        # v7x (64 MiB VMEM/TC) or unknown hardware: conservative balanced
        # tiles; 1024-balanced tiles already cross into MXU-bound at 3.2 TB/s.
        return dict(tm=1024, tn=1024, tk=512, budget=40 << 20, cap=56 << 20)
    # v6e: 128 MiB VMEM, 918 TF/s vs ~1.4 TB/s -> want 1/tm + 1/tn <~ 1/650.
    return dict(tm=1536, tn=1536, tk=512, budget=60 << 20, cap=100 << 20)


def _footprint_bytes(tm, tk, tn, x_b, cmp_b, out_b, multi_k):
    fp = (2 * tm * tk * x_b        # x tiles, double-buffered (HBM dtype)
          + tm * tk * cmp_b        # in-kernel compute-dtype cast temporary
          + 2 * tk * tn * cmp_b    # W.T column tiles (compute dtype)
          + 2 * tm * tn * out_b    # output tiles
          + 2 * tn * 4)            # bias row (f32)
    if multi_k:
        fp += tm * tn * 4          # f32 accumulator scratch
    return fp


def _choose_tk(H, tk_target):
    """Reduction tile: full H if small, else a 128-multiple that divides H
    (avoids any wrapper-side zero-pad of x), else the raw target (x padded)."""
    tk_target = max(128, _round_up(tk_target, 128))
    if H <= tk_target:
        return H                          # single k-step, no padding
    for cand in range(tk_target, 127, -128):
        if H % cand == 0:
            return cand                   # divides H exactly: no x padding
    if H <= 2 * tk_target:
        return H                          # still cheap to keep whole
    return tk_target                      # fallback: x zero-padded along K


def _choose_tiles(M, H, C, x_b, cmp_b, out_b, *, bf16_compute):
    """Pick (tm, tk, tn): large, roughly balanced tm ~ tn; modest tk."""
    cfg = _tile_config()
    sub = 16 if bf16_compute else 8       # bf16 sublane packing is (16, 128)

    tm_cap = _round_up(max(M, 1), 8)      # never exceed the (8-padded) rows
    tm = min(_round_up(cfg["tm"], sub), _round_up(max(M, 1), sub), tm_cap)
    # Targets (512/1024/1536) are already 256-multiples for the 256-wide MXU.
    tn = min(_round_up(cfg["tn"], 128), _round_up(max(C, 1), 128))
    tk = _choose_tk(H, cfg["tk"])

    budget = cfg["budget"]

    def _fp():
        return _footprint_bytes(tm, tk, tn, x_b, cmp_b, out_b, tk < H)

    # Shrink the larger output-tile dim first (traffic ~ 1/tm + 1/tn), then tk.
    while _fp() > budget:
        if tm >= tn and tm > 256:
            tm = _round_up(tm // 2, sub)
        elif tn > 256:
            tn = max(_round_up(tn // 2, 128), 128)
        elif tk > 256:
            tk = max(_round_up(tk // 2, 128), 128)
        else:
            break
    return tm, tk, tn


# ---------------------------------------------------------------------------
# Kernels (compute-dtype cast of x is fused: VPU work hidden under the MXU)
# ---------------------------------------------------------------------------
def _classifier_kernel_bias(x_ref, wt_ref, b_ref, o_ref, acc_ref):
    # x_ref: (tm, tk)  wt_ref: (tk, tn)  b_ref: (1, tn) f32
    # o_ref: (tm, tn)  acc_ref: (tm, tn) f32 scratch
    k = pl.program_id(2)

    @pl.when(k == 0)
    def _():
        acc_ref[...] = jnp.zeros_like(acc_ref)

    x = x_ref[...].astype(wt_ref.dtype)
    acc_ref[...] += jnp.dot(x, wt_ref[...], preferred_element_type=jnp.float32)

    @pl.when(k == pl.num_programs(2) - 1)
    def _():
        o_ref[...] = (acc_ref[...] + b_ref[...]).astype(o_ref.dtype)


def _classifier_kernel_nobias(x_ref, wt_ref, o_ref, acc_ref):
    k = pl.program_id(2)

    @pl.when(k == 0)
    def _():
        acc_ref[...] = jnp.zeros_like(acc_ref)

    x = x_ref[...].astype(wt_ref.dtype)
    acc_ref[...] += jnp.dot(x, wt_ref[...], preferred_element_type=jnp.float32)

    @pl.when(k == pl.num_programs(2) - 1)
    def _():
        o_ref[...] = acc_ref[...].astype(o_ref.dtype)


def _classifier_kernel_bias_1k(x_ref, wt_ref, b_ref, o_ref):
    # Single k-step specialization: no accumulator scratch, no zero-init/RMW.
    x = x_ref[...].astype(wt_ref.dtype)
    acc = jnp.dot(x, wt_ref[...], preferred_element_type=jnp.float32)
    o_ref[...] = (acc + b_ref[...]).astype(o_ref.dtype)


def _classifier_kernel_nobias_1k(x_ref, wt_ref, o_ref):
    x = x_ref[...].astype(wt_ref.dtype)
    o_ref[...] = jnp.dot(x, wt_ref[...],
                         preferred_element_type=jnp.float32).astype(o_ref.dtype)


# ---------------------------------------------------------------------------
# Parameter prep (hoisted out of the per-call path) + apply
# ---------------------------------------------------------------------------
def prepare_classifier_params(weight, bias, *, tk, tn, compute_dtype=None):
    """weight: [C, H] (PyTorch layout); bias: [C] or None.
    Returns (wt_padded [Hp, Cp] in compute dtype, bias_padded [1, Cp] f32 or
    None).  Transpose / cast / pad are done once here, not per forward call."""
    C, H = weight.shape
    Hp = _round_up(H, tk)
    Cp = _round_up(C, tn)
    wt = weight.T
    if compute_dtype is not None:
        wt = wt.astype(compute_dtype)
    if Hp != H or Cp != C:
        wt = jnp.pad(wt, ((0, Hp - H), (0, Cp - C)))
    if bias is None:
        b2d = None
    else:
        b2d = bias.astype(jnp.float32).reshape(1, C)
        if Cp != C:
            b2d = jnp.pad(b2d, ((0, 0), (0, Cp - C)))
    return wt, b2d


def classifier3d_apply(x2d, wt_p, b_p, *, num_classes, tm, tk, tn, out_dtype=None):
    """x2d: [M, H] (HBM dtype, cast fused in-kernel); wt_p: [Hp, Cp] padded
    W.T in compute dtype; b_p: [1, Cp] f32 or None."""
    M, H = x2d.shape
    Hp, Cp = wt_p.shape
    out_dtype = out_dtype or x2d.dtype
    # Tile sizes must match the ones used in prepare_classifier_params.
    assert Cp % tn == 0 and Hp % tk == 0, (
        "tile sizes passed to classifier3d_apply must match prepare_classifier_params")

    if Hp != H:
        # Fallback only (tk does not divide H): zero-pad the reduction dim.
        x2d = jnp.pad(x2d, ((0, 0), (0, Hp - H)))

    m_tiles = pl.cdiv(M, tm)
    c_tiles = Cp // tn
    k_steps = Hp // tk
    # Leading (parallel) grid axis = the one with more tiles, so both v7x
    # TensorCores get work even when C fits into a single tn tile.
    lead_m = m_tiles >= c_tiles

    if k_steps == 1:
        grid = (m_tiles, c_tiles) if lead_m else (c_tiles, m_tiles)
        if lead_m:
            x_map = lambda i, j: (i, 0)
            w_map = lambda i, j: (0, j)
            b_map = lambda i, j: (0, j)
            o_map = lambda i, j: (i, j)
        else:
            x_map = lambda j, i: (i, 0)
            w_map = lambda j, i: (0, j)
            b_map = lambda j, i: (0, j)
            o_map = lambda j, i: (i, j)
        dims = ("parallel", "parallel")
        scratch = []
        kernel = _classifier_kernel_bias_1k if b_p is not None else _classifier_kernel_nobias_1k
    else:
        grid = (m_tiles, c_tiles, k_steps) if lead_m else (c_tiles, m_tiles, k_steps)
        if lead_m:
            x_map = lambda i, j, k: (i, k)
            w_map = lambda i, j, k: (k, j)
            b_map = lambda i, j, k: (0, j)
            o_map = lambda i, j, k: (i, j)
        else:
            x_map = lambda j, i, k: (i, k)
            w_map = lambda j, i, k: (k, j)
            b_map = lambda j, i, k: (0, j)
            o_map = lambda j, i, k: (i, j)
        dims = ("parallel", "parallel", "arbitrary")
        scratch = [pltpu.VMEM((tm, tn), jnp.float32)]
        kernel = _classifier_kernel_bias if b_p is not None else _classifier_kernel_nobias

    x_spec = pl.BlockSpec((tm, tk), x_map)
    w_spec = pl.BlockSpec((tk, tn), w_map)
    o_spec = pl.BlockSpec((tm, tn), o_map)

    if b_p is not None:
        in_specs = [x_spec, w_spec, pl.BlockSpec((1, tn), b_map)]
        args = (x2d, wt_p, b_p)
    else:
        in_specs = [x_spec, w_spec]
        args = (x2d, wt_p)

    cfg = _tile_config()
    fp = _footprint_bytes(tm, tk, tn, x2d.dtype.itemsize, wt_p.dtype.itemsize,
                          jnp.dtype(out_dtype).itemsize, k_steps > 1)
    vmem_limit = int(min(cfg["cap"], max(32 << 20, fp + (6 << 20))))
    vmem_limit = max(vmem_limit, int(fp + (1 << 20)))

    out2d = pl.pallas_call(
        kernel,
        out_shape=jax.ShapeDtypeStruct((M, Cp), out_dtype),
        grid_spec=pltpu.PrefetchScalarGridSpec(
            num_scalar_prefetch=0,
            grid=grid,
            in_specs=in_specs,
            out_specs=o_spec,
            scratch_shapes=scratch,
        ),
        compiler_params=pltpu.CompilerParams(
            dimension_semantics=dims,
            vmem_limit_bytes=vmem_limit,
        ),
    )(*args)

    if Cp != num_classes:
        out2d = out2d[:, :num_classes]
    return out2d


def classifier3d_forward(x, weight, bias, *, tm=None, tk=None, tn=None,
                         compute_dtype="auto"):
    """x: [..., in_features]; weight: [num_classes, in_features];
    bias: [num_classes] or None.  Returns [..., num_classes] in x.dtype.

    compute_dtype: "auto" (bf16 matmul with f32 accumulation when x is f32),
    None (keep x dtype), or an explicit dtype."""
    lead_shape = x.shape[:-1]
    H = x.shape[-1]
    C = weight.shape[0]
    M = 1
    for d in lead_shape:
        M *= int(d)

    if isinstance(compute_dtype, str) and compute_dtype == "auto":
        cdt = jnp.dtype(jnp.bfloat16) if x.dtype == jnp.dtype(jnp.float32) else jnp.dtype(x.dtype)
    elif compute_dtype is None:
        cdt = jnp.dtype(x.dtype)
    else:
        cdt = jnp.dtype(compute_dtype)
    out_dt = x.dtype
    bf16_compute = cdt == jnp.dtype(jnp.bfloat16)

    auto_tm, auto_tk, auto_tn = _choose_tiles(
        M, H, C, jnp.dtype(x.dtype).itemsize, cdt.itemsize,
        jnp.dtype(out_dt).itemsize, bf16_compute=bf16_compute)
    tm = auto_tm if tm is None else max(8, min(_round_up(tm, 8), _round_up(M, 8)))
    tn = auto_tn if tn is None else max(128, _round_up(tn, 128))
    tk = auto_tk if tk is None else (H if tk >= H else max(128, _round_up(tk, 128)))

    wt_p, b_p = prepare_classifier_params(weight, bias, tk=tk, tn=tn,
                                          compute_dtype=cdt)
    out2d = classifier3d_apply(x.reshape(M, H), wt_p, b_p,
                               num_classes=C, tm=tm, tk=tk, tn=tn,
                               out_dtype=out_dt)
    return out2d.reshape(*lead_shape, C)


# ---------------------------------------------------------------------------
# Synthetic init mimicking the PyTorch module's initializers
# ---------------------------------------------------------------------------
def init_params(key, in_features, num_classes, dtype=jnp.float32):
    kw, kb = jax.random.split(key)
    a = math.sqrt(5.0)  # kaiming_uniform_(a=sqrt(5))
    w_bound = math.sqrt(6.0 / ((1.0 + a * a) * in_features))
    weight = jax.random.uniform(
        kw, (num_classes, in_features), dtype=dtype, minval=-w_bound, maxval=w_bound)
    b_bound = math.sqrt(3.0 / in_features)  # xavier-ish bias init (fan_in)
    bias = jax.random.uniform(
        kb, (num_classes,), dtype=dtype, minval=-b_bound, maxval=b_bound)
    return weight, bias


if __name__ == "__main__":
    key = jax.random.PRNGKey(0)
    kx, kp, kx2, kp2 = jax.random.split(key, 4)

    def ref_f32(x, w, b):
        out = x.reshape(-1, x.shape[-1]) @ w.T
        if b is not None:
            out = out + b
        return out.reshape(*x.shape[:-1], w.shape[0])

    def ref_bf16(x, w, b):
        xb = x.astype(jnp.bfloat16).astype(jnp.float32)
        wb = w.astype(jnp.bfloat16).astype(jnp.float32)
        out = xb.reshape(-1, xb.shape[-1]) @ wb.T
        if b is not None:
            out = out + b.astype(jnp.float32)
        return out.reshape(*x.shape[:-1], w.shape[0])

    # --- test 1: small module-like shapes ----------------------------------
    B, S, H, C = 2, 8, 32, 16
    x = jax.random.normal(kx, (B, S, H), dtype=jnp.float32)
    weight, bias = init_params(kp, H, C)

    # default path: bf16 compute, f32 accumulation, f32 output
    out = jax.block_until_ready(classifier3d_forward(x, weight, bias))
    assert out.shape == (B, S, C), out.shape
    assert out.dtype == x.dtype, out.dtype
    assert jnp.allclose(out, ref_bf16(x, weight, bias), atol=2e-3, rtol=2e-3), \
        "bf16-compute mismatch"

    # explicit f32 compute (opt-out of bf16): exact path
    out_f32 = jax.block_until_ready(
        classifier3d_forward(x, weight, bias, compute_dtype=jnp.float32))
    assert jnp.allclose(out_f32, ref_f32(x, weight, bias), atol=1e-4, rtol=1e-4), \
        "f32-compute mismatch"

    # bias=None path (dedicated no-bias kernel)
    out_nb = jax.block_until_ready(
        classifier3d_forward(x, weight, None, compute_dtype=jnp.float32))
    assert jnp.allclose(out_nb, ref_f32(x, weight, None), atol=1e-4, rtol=1e-4), \
        "no-bias mismatch"

    # --- test 2: multi-tile grid (C tiling, partial M tile, K reduction) ---
    B2, S2, H2, C2 = 2, 36, 256, 200
    x2 = jax.random.normal(kx2, (B2, S2, H2), dtype=jnp.float32)
    w2, b2 = init_params(kp2, H2, C2)

    out2 = jax.block_until_ready(
        classifier3d_forward(x2, w2, b2, tm=32, tk=128, tn=128,
                             compute_dtype=jnp.float32))
    assert out2.shape == (B2, S2, C2), out2.shape
    assert jnp.allclose(out2, ref_f32(x2, w2, b2), atol=1e-4, rtol=1e-4), \
        "tiled f32 mismatch"

    # default bf16 compute with a forced multi-k reduction (fused in-kernel cast)
    out2b = jax.block_until_ready(classifier3d_forward(x2, w2, b2, tk=128))
    assert out2b.shape == (B2, S2, C2), out2b.shape
    assert jnp.allclose(out2b, ref_bf16(x2, w2, b2), atol=2e-3, rtol=2e-3), \
        "tiled bf16 mismatch"

    print("KERNEL_OK")
</pallas_src>

<mosaic_0001>
module attributes {stable_mosaic.version = 11 : i64} {
  func.func @_classifier_kernel_bias_1k(%arg0: i32, %arg1: i32, %arg2: memref<16x32xf32, #tpu.memory_space<vmem>>, %arg3: memref<32x128xbf16, #tpu.memory_space<vmem>>, %arg4: memref<1x128xf32, #tpu.memory_space<vmem>>, %arg5: memref<16x128xf32, #tpu.memory_space<vmem>>) attributes {dimension_semantics = [#tpu.dimension_semantics<parallel>, #tpu.dimension_semantics<parallel>], iteration_bounds = array<i64: 1, 1>, scalar_prefetch = 0 : i64, scratch_operands = 0 : i64, tpu.core_type = #tpu.core_type<tc>, window_params = [{transform_indices = @transform_0, window_bounds = array<i64: 16, 32>}, {transform_indices = @transform_1, window_bounds = array<i64: 32, 128>}, {transform_indices = @transform_2, window_bounds = array<i64: 1, 128>}, {transform_indices = @transform_3, window_bounds = array<i64: 16, 128>}]} {
    %c0 = arith.constant 0 : index
    %c0_0 = arith.constant 0 : index
    %0 = vector.load %arg2[%c0, %c0_0] : memref<16x32xf32, #tpu.memory_space<vmem>>, vector<16x32xf32>
    %1 = arith.truncf %0 : vector<16x32xf32> to vector<16x32xbf16>
    %c0_1 = arith.constant 0 : index
    %c0_2 = arith.constant 0 : index
    %2 = vector.load %arg3[%c0_1, %c0_2] : memref<32x128xbf16, #tpu.memory_space<vmem>>, vector<32x128xbf16>
    %cst = arith.constant dense<0.000000e+00> : vector<16x128xf32>
    %3 = tpu.matmul %1, %2, %cst {dimension_numbers = #tpu.dot_dimension_numbers<[1], [0], [0], [1], [0, 0, 1, 1], [], []>} : vector<16x32xbf16>, vector<32x128xbf16>, vector<16x128xf32> -> vector<16x128xf32>
    %c0_3 = arith.constant 0 : index
    %c0_4 = arith.constant 0 : index
    %4 = vector.load %arg4[%c0_3, %c0_4] : memref<1x128xf32, #tpu.memory_space<vmem>>, vector<1x128xf32>
    %5 = vector.broadcast %4 : vector<1x128xf32> to vector<16x128xf32>
    %6 = arith.addf %3, %5 : vector<16x128xf32>
    %c0_5 = arith.constant 0 : index
    %c0_6 = arith.constant 0 : index
    %7 = vector.load %arg5[%c0_5, %c0_6] : memref<16x128xf32, #tpu.memory_space<vmem>>, vector<16x128xf32>
    tpu.vector_store %arg5[%c0_5, %c0_6], %6 {strides = array<i32>} : memref<16x128xf32, #tpu.memory_space<vmem>>, vector<16x128xf32>,
    return
  }
  func.func @transform_0(%arg0: i32, %arg1: i32) -> (i32, i32) {
    %c0_i32 = arith.constant 0 : i32
    %c0_i32_0 = arith.constant 0 : i32
    return %arg0, %c0_i32 : i32, i32
  }
  func.func @transform_1(%arg0: i32, %arg1: i32) -> (i32, i32) {
    %c0_i32 = arith.constant 0 : i32
    %c0_i32_0 = arith.constant 0 : i32
    return %c0_i32, %arg1 : i32, i32
  }
  func.func @transform_2(%arg0: i32, %arg1: i32) -> (i32, i32) {
    %c0_i32 = arith.constant 0 : i32
    %c0_i32_0 = arith.constant 0 : i32
    return %c0_i32, %arg1 : i32, i32
  }
  func.func @transform_3(%arg0: i32, %arg1: i32) -> (i32, i32) {
    %c0_i32 = arith.constant 0 : i32
    return %arg0, %arg1 : i32, i32
  }
}

</mosaic_0001>

<llo_original>
// kernel: tpu_custom_call.1
$region0: #{tpu_custom_call.1}
  #allocation0 [shape = 'u32[]', space=smem, size = 0x4, offset = 0x4, fixed_abs, tag = 'smem constant byte address 0x4 - core index']
  #allocation1 [shape = 'u32[72,128]{1,0:T(1,128)}', space=vmem, size = 0x9000, scoped, tag = 'internal scratch']
  %s0 = inlined_call_operand.hbm [shape: f32[16,32], index: 0, kind: input, shape index: {}]
  %s1 = inlined_call_operand.hbm [shape: bf16[32,128], index: 1, kind: input, shape index: {}]
  %s2 = inlined_call_operand.vmem [shape: f32[1,128], index: 2, kind: input, shape index: {}]
  %s3 = inlined_call_operand.hbm [shape: f32[16,128], index: 3, kind: output, shape index: {}]
  %s4 = sld [smem:[#allocation0]]
  $region30: #{tpu_custom_call.1} parent=0
    _
  %s6 = ssub.s32 1, %s4
  %s7 = scalar_select 0, %s6, %s4
  $region1: #{tpu_custom_call.1} parent=0
    #allocation2 [shape = 'u8[8192]{0}', space=vmem, size = 0x2000, scoped, tag = 'input window, operand 0, single buffered']
    #allocation3 [shape = 's32[1]{0}', space=sflag, size = 0x4, scoped, tag = 'scoped memory for tpu_custom_call.1']
    #allocation4 [shape = 's32[1]{0}', space=sflag, size = 0x4, scoped, tag = 'scoped memory for tpu_custom_call.1']
    #allocation5 [shape = 'u8[8192]{0}', space=vmem, size = 0x2000, scoped, tag = 'input window, operand 1, single buffered']
    #allocation6 [shape = 's32[1]{0}', space=sflag, size = 0x4, scoped, tag = 'scoped memory for tpu_custom_call.1']
    #allocation7 [shape = 'u8[8192]{0}', space=vmem, size = 0x2000, scoped, tag = 'output window, operand 0, single buffered']
    %8 = vsyncpa [#allocation3], 0
    %9 = vsyncpa [#allocation6], 0
    %10 = vsyncpa [#allocation4], 0
    // Predicated region
    $region2: #{tpu_custom_call.1} parent=1 // pred_check
      _
    $region3: #{tpu_custom_call.1} parent=1 // pred_check_branch
      %12 = sbr.rel (0) target = $region5
    $region4: #{tpu_custom_call.1} parent=1 // pred_region
      %14 = vsyncadd [#allocation3], 0
      %s15 = sshll.u32 %s0, 4
      %s16 = int_to_ptr.hbm [resolvable:$true] %s15
      %s17 = sshll.u32 [#allocation2], 4
      %s18 = int_to_ptr.vmem [resolvable:$true] %s17
      %23 = dma.hbm_to_vmem [thread:$0]  %s16, 256, %s18, [#allocation3], 128, 128, 8
    $region5: #{tpu_custom_call.1} parent=1 // pred_fallthru
      _
    // Predicated region
    $region6: #{tpu_custom_call.1} parent=1 // pred_check
      _
    $region7: #{tpu_custom_call.1} parent=1 // pred_check_branch
      %25 = sbr.rel (0) target = $region9
    $region8: #{tpu_custom_call.1} parent=1 // pred_region
      %27 = vsyncadd [#allocation6], 0
      %s28 = sshll.u32 %s1, 4
      %s29 = int_to_ptr.hbm [resolvable:$true] %s28
      %s30 = sshll.u32 [#allocation5], 4
      %s31 = int_to_ptr.vmem [resolvable:$true] %s30
      %36 = dma.hbm_to_vmem [thread:$0]  %s29, 256, %s31, [#allocation6], 64, 64, 4
    $region9: #{tpu_custom_call.1} parent=1 // pred_fallthru
      _
    // Predicated region
    $region10: #{tpu_custom_call.1} parent=1 // pred_check
      _
    $region11: #{tpu_custom_call.1} parent=1 // pred_check_branch
      %38 = sbr.rel (0) target = $region13
    $region12: #{tpu_custom_call.1} parent=1 // pred_region
      _
    $region13: #{tpu_custom_call.1} parent=1 // pred_fallthru
      _
    // Predicated region
    $region14: #{tpu_custom_call.1} parent=1 // pred_check
      _
    $region15: #{tpu_custom_call.1} parent=1 // pred_check_branch
      %40 = sbr.rel (0) target = $region17
    $region16: #{tpu_custom_call.1} parent=1 // pred_region
      %42 = dma.done [#allocation3], 256
    $region17: #{tpu_custom_call.1} parent=1 // pred_fallthru
      _
    // Predicated region
    $region18: #{tpu_custom_call.1} parent=1 // pred_check
      _
    $region19: #{tpu_custom_call.1} parent=1 // pred_check_branch
      %44 = sbr.rel (0) target = $region21
    $region20: #{tpu_custom_call.1} parent=1 // pred_region
      %46 = dma.done [#allocation6], 256
    $region21: #{tpu_custom_call.1} parent=1 // pred_fallthru
      _
    %v48 = vld [vmem:[#allocation2] sm:$0xff]
    %v49 = vld [vmem:[#allocation2 + $0x8] sm:$0xff]
    %v50 = vpack.c.bf16 %v49, %v48
    %v51 = vld [vmem:[#allocation5] sm:$0xf]
    %v52 = vld [vmem:[#allocation5 + $0x4] sm:$0xf]
    %v53 = vld [vmem:[#allocation5 + $0x8] sm:$0xf]
    %v54 = vld [vmem:[#allocation5 + $0xc] sm:$0xf]
    %v55 = vld [vmem:[%s2] sm:$0x1]
    %v57 = vperm.slane %v55, 0
    %v63 = vunpack.c.l.b16 %v51
    %v64 = vunpack.c.l.b16 %v52
    %v65 = vunpack.c.l.b16 %v53
    %v66 = vunpack.c.l.b16 %v54
    %v67 = vpack.c.b16 %v64, %v63
    %v68 = vpack.c.b16 %v66, %v65
    %vm71 = vcmask 261120
    %v73 = vsel %vm71, %v50, 0
    %75 = vmatpush.bf16.msra.mxu0 0
    %76 = vmatpush.bf16.msra.mxu0 0
    %77 = vmatpush.bf16.msra.mxu0 0
    %78 = vmatpush.bf16.msra.mxu0 0
    %79 = vmatpush.bf16.msra.mxu0 0
    %80 = vmatpush.bf16.msra.mxu0 0
    %81 = vmatpush.bf16.msra.mxu0 %v68
    %82 = vmatpush.bf16.msra.mxu0 %v67
    %83 = vmatmul.bf16.gmra.mxu0 %v73
    %v84 = vpop.f32.mrf.mxu0
    %v85 = vadd.f32 %v57, %v84
    %v86 = vpop.f32.mrf.mxu0
    %v87 = vadd.f32 %v57, %v86
    %88 = vdwg.mxu0
    %89 = vst [vmem:[#allocation7] sm:$0xff] %v85
    %90 = vst [vmem:[#allocation7 + $0x8] sm:$0xff] %v87
    // Predicated region
    $region22: #{tpu_custom_call.1} parent=1 // pred_check
      _
    $region23: #{tpu_custom_call.1} parent=1 // pred_check_branch
      %92 = sbr.rel (0) target = $region25
    $region24: #{tpu_custom_call.1} parent=1 // pred_region
      %94 = vsyncadd [#allocation4], 0
      %s95 = sshll.u32 [#allocation7], 4
      %s96 = int_to_ptr.vmem [resolvable:$true] %s95
      %s97 = sshll.u32 %s3, 4
      %s98 = int_to_ptr.hbm [resolvable:$true] %s97
      %103 = dma.vmem_to_hbm [thread:$0]  %s96, 256, %s98, [#allocation4], 128, 128, 8
    $region25: #{tpu_custom_call.1} parent=1 // pred_fallthru
      _
    // Predicated region
    $region26: #{tpu_custom_call.1} parent=1 // pred_check
      _
    $region27: #{tpu_custom_call.1} parent=1 // pred_check_branch
      %105 = sbr.rel (0) target = $region29
    $region28: #{tpu_custom_call.1} parent=1 // pred_region
      %107 = dma.done [#allocation4], 256
    $region29: #{tpu_custom_call.1} parent=1 // pred_fallthru
      _
    %108 = vsyncpa [#allocation3], 1
    %109 = vsyncpa [#allocation6], 1
    %110 = vsyncpa [#allocation4], 1

</llo_original>
